<compile_context>
chip_gen: v7x
topology: tpu7x:2x2x1
jax: 0.10.0
libtpu: 0.0.40
codegen_flags: <defaults>
</compile_context>

<pallas_src>
import math
from functools import partial

import jax
import jax.numpy as jnp
from jax.experimental import pallas as pl
from jax.experimental.pallas import tpu as pltpu

# Weights at or below this size stay whole-array resident in VMEM (grid-less
# path).  8 MiB bf16 leaves comfortable headroom even under v7x's 32 MiB scoped
# default with double-buffered inputs.
_SMALL_WEIGHT_BYTES = 8 << 20


def de_kernel(x_ref, w_ref, b_ref, o_ref):
    # x_ref: (M, D_in)        f32  VMEM
    # w_ref: (D_in, tn|D_out) bf16 VMEM   (fused w1 @ w2, possibly a D_out tile)
    # b_ref: (1, tn|D_out)    f32  VMEM   (fused b1 @ w2 + b2)
    # o_ref: (M, tn|D_out)    f32  VMEM
    x = x_ref[...].astype(jnp.bfloat16)  # x is tiny vs. weights; cast in-kernel
    y = jnp.dot(x, w_ref[...], preferred_element_type=jnp.float32)
    o_ref[...] = (y + b_ref[...]).astype(o_ref.dtype)


def fold_params(w1, b1, w2, b2):
    """Fold the two Linear layers (valid because LeakyReLU(True) == identity).

    Weights are stored (in, out), i.e. transposed vs PyTorch's (out, in).
    Done once at param-load time, outside the kernel.
    """
    w = jnp.dot(w1, w2, preferred_element_type=jnp.float32).astype(jnp.bfloat16)
    b = (jnp.dot(b1, w2, preferred_element_type=jnp.float32) + b2).astype(jnp.float32)
    return w, b.reshape(1, -1)


@partial(jax.jit, static_argnames=("tn", "tiled"))
def de_forward(x, w_fused, b_fused, *, tn=1024, tiled=None):
    """Forward pass of De.

    x:       (..., D_in) float32     (all leading dims are flattened into M)
    w_fused: (D_in, D_out) bfloat16
    b_fused: (1, D_out) float32
    tn:      D_out tile width for the tiled path (multiple of 128).
    tiled:   None = auto (by weight size); True/False forces a path.
    returns  (..., D_out) float32
    """
    lead = x.shape[:-1]
    d_in = x.shape[-1]
    d_out = w_fused.shape[1]
    m = math.prod(lead) if lead else 1
    x2 = x.reshape(m, d_in)

    weight_bytes = d_in * d_out * jnp.dtype(w_fused.dtype).itemsize
    cost = pl.CostEstimate(
        flops=2 * m * d_in * d_out,
        transcendentals=0,
        bytes_accessed=(m * d_in * 4) + weight_bytes + (d_out * 4) + (m * d_out * 4),
    )

    use_tiled = (weight_bytes > _SMALL_WEIGHT_BYTES) if tiled is None else tiled
    use_tiled = use_tiled and (d_out % tn == 0) and (tn % 128 == 0)

    out_shape = jax.ShapeDtypeStruct((m, d_out), jnp.float32)

    if not use_tiled:
        # Grid-less: whole arrays resident in VMEM, single MXU call.
        vmem = pl.BlockSpec(memory_space=pltpu.MemorySpace.VMEM)
        out = pl.pallas_call(
            de_kernel,
            out_shape=out_shape,
            in_specs=[vmem, vmem, vmem],
            out_specs=vmem,
            cost_estimate=cost,
        )(x2, w_fused, b_fused)
    else:
        # Tiled over D_out: lane-dense output tiles, pipelined weight DMA,
        # "parallel" axis -> sharded across TensorCores on v7x.
        grid = (d_out // tn,)
        out = pl.pallas_call(
            de_kernel,
            out_shape=out_shape,
            grid_spec=pltpu.PrefetchScalarGridSpec(
                num_scalar_prefetch=0,
                grid=grid,
                in_specs=[
                    pl.BlockSpec((m, d_in), lambda j: (0, 0)),
                    pl.BlockSpec((d_in, tn), lambda j: (0, j)),
                    pl.BlockSpec((1, tn), lambda j: (0, j)),
                ],
                out_specs=pl.BlockSpec((m, tn), lambda j: (0, j)),
            ),
            compiler_params=pltpu.CompilerParams(
                dimension_semantics=("parallel",),
            ),
            cost_estimate=cost,
        )(x2, w_fused, b_fused)

    return out.reshape(*lead, d_out)


def init_params(key, input_size, output_size, c_size):
    """Deterministic init mimicking nn.Linear default (uniform +-1/sqrt(fan_in))."""
    k1, k2, k3, k4 = jax.random.split(key, 4)
    lim1 = 1.0 / jnp.sqrt(jnp.float32(input_size))
    lim2 = 1.0 / jnp.sqrt(jnp.float32(c_size))
    # Stored as (in, out) == transpose of PyTorch's (out, in) weight.
    w1 = jax.random.uniform(k1, (input_size, c_size), jnp.float32, -lim1, lim1)
    b1 = jax.random.uniform(k2, (c_size,), jnp.float32, -lim1, lim1)
    w2 = jax.random.uniform(k3, (c_size, output_size), jnp.float32, -lim2, lim2)
    b2 = jax.random.uniform(k4, (output_size,), jnp.float32, -lim2, lim2)
    return w1, b1, w2, b2


if __name__ == "__main__":
    key = jax.random.PRNGKey(0)
    kx, kp = jax.random.split(key)

    # Decoder-ish shapes: latent 64 -> hidden 128 -> output 1024.
    # M=128 per the perf review: fills MXU rows, keeps stores unmasked (mult of 8),
    # and amortizes the weight DMA across the batch.
    M = 128
    input_size, c_size, output_size = 64, 128, 1024

    x = jax.random.normal(kx, (M, input_size), jnp.float32)
    w1, b1, w2, b2 = init_params(kp, input_size, output_size, c_size)
    w_fused, b_fused = fold_params(w1, b1, w2, b2)

    # Pure-JAX reference of the ORIGINAL (unfused, f32) module.
    # LeakyReLU(negative_slope=True==1.0) is the identity, so it is omitted.
    ref = x @ w1 + b1
    ref = ref @ w2 + b2

    # 1) Auto path (small weights -> grid-less whole-array VMEM blocks).
    out = jax.block_until_ready(de_forward(x, w_fused, b_fused))
    assert out.shape == (M, output_size)
    assert jnp.allclose(out, ref, rtol=2e-2, atol=2e-2), float(
        jnp.max(jnp.abs(out - ref)))

    # 2) Forced tiled path (exercises the grid-over-D_out / "parallel" layout
    #    that large decoder-scale weights would take), tn=512 -> grid=(2,).
    out_t = jax.block_until_ready(de_forward(x, w_fused, b_fused, tn=512, tiled=True))
    assert out_t.shape == (M, output_size)
    assert jnp.allclose(out_t, ref, rtol=2e-2, atol=2e-2), float(
        jnp.max(jnp.abs(out_t - ref)))

    print("KERNEL_OK")
</pallas_src>

<mosaic_0001>
module attributes {stable_mosaic.version = 11 : i64} {
  func.func @de_kernel(%arg0: memref<128x64xf32, #tpu.memory_space<vmem>>, %arg1: memref<64x1024xbf16, #tpu.memory_space<vmem>>, %arg2: memref<1x1024xf32, #tpu.memory_space<vmem>>, %arg3: memref<128x1024xf32, #tpu.memory_space<vmem>>) attributes {dimension_semantics = [], scalar_prefetch = 0 : i64, scratch_operands = 0 : i64, tpu.core_type = #tpu.core_type<tc>} {
    %c0 = arith.constant 0 : index
    %c0_0 = arith.constant 0 : index
    %0 = vector.load %arg0[%c0, %c0_0] : memref<128x64xf32, #tpu.memory_space<vmem>>, vector<128x64xf32>
    %1 = arith.truncf %0 : vector<128x64xf32> to vector<128x64xbf16>
    %c0_1 = arith.constant 0 : index
    %c0_2 = arith.constant 0 : index
    %2 = vector.load %arg1[%c0_1, %c0_2] : memref<64x1024xbf16, #tpu.memory_space<vmem>>, vector<64x1024xbf16>
    %cst = arith.constant dense<0.000000e+00> : vector<128x1024xf32>
    %3 = tpu.matmul %1, %2, %cst {dimension_numbers = #tpu.dot_dimension_numbers<[1], [0], [0], [1], [0, 0, 1, 1], [], []>} : vector<128x64xbf16>, vector<64x1024xbf16>, vector<128x1024xf32> -> vector<128x1024xf32>
    %c0_3 = arith.constant 0 : index
    %c0_4 = arith.constant 0 : index
    %4 = vector.load %arg2[%c0_3, %c0_4] : memref<1x1024xf32, #tpu.memory_space<vmem>>, vector<1x1024xf32>
    %5 = vector.broadcast %4 : vector<1x1024xf32> to vector<128x1024xf32>
    %6 = arith.addf %3, %5 : vector<128x1024xf32>
    %c0_5 = arith.constant 0 : index
    %c0_6 = arith.constant 0 : index
    %7 = vector.load %arg3[%c0_5, %c0_6] : memref<128x1024xf32, #tpu.memory_space<vmem>>, vector<128x1024xf32>
    tpu.vector_store %arg3[%c0_5, %c0_6], %6 {strides = array<i32>} : memref<128x1024xf32, #tpu.memory_space<vmem>>, vector<128x1024xf32>,
    return
  }
}

</mosaic_0001>

<llo_original>
// kernel: de_forward.1
$region0: #{de_forward.1}
  #allocation0 [shape = 'u32[]', space=smem, size = 0x4, offset = 0x4, fixed_abs, tag = 'smem constant byte address 0x4 - core index']
  #allocation1 [shape = 'u32[144,128]{1,0:T(1,128)}', space=vmem, size = 0x12000, scoped, tag = 'internal scratch']
  %s0 = inlined_call_operand.vmem [shape: f32[128,64], index: 0, kind: input, shape index: {}]
  %s1 = inlined_call_operand.hbm [shape: bf16[64,1024], index: 1, kind: input, shape index: {}]
  %s2 = inlined_call_operand.vmem [shape: f32[1,1024], index: 2, kind: input, shape index: {}]
  %s3 = inlined_call_operand.hbm [shape: f32[128,1024], index: 3, kind: output, shape index: {}]
  %s4 = sld [smem:[#allocation0]]
  $region26: #{de_forward.1} parent=0
    _
  %s6 = ssub.s32 1, %s4
  %s7 = scalar_select 0, %s6, %s4
  $region1: #{de_forward.1} parent=0
    #allocation2 [shape = 'u8[131072]{0}', space=vmem, size = 0x20000, scoped, tag = 'input window, operand 1, single buffered']
    #allocation3 [shape = 's32[1]{0}', space=sflag, size = 0x4, scoped, tag = 'scoped memory for de_forward.1']
    #allocation4 [shape = 's32[1]{0}', space=sflag, size = 0x4, scoped, tag = 'scoped memory for de_forward.1']
    #allocation5 [shape = 'u8[524288]{0}', space=vmem, size = 0x80000, scoped, tag = 'output window, operand 0, single buffered']
    %8 = vsyncpa [#allocation3], 0
    %9 = vsyncpa [#allocation4], 0
    // Predicated region
    $region2: #{de_forward.1} parent=1 // pred_check
      _
    $region3: #{de_forward.1} parent=1 // pred_check_branch
      %11 = sbr.rel (0) target = $region5
    $region4: #{de_forward.1} parent=1 // pred_region
      _
    $region5: #{de_forward.1} parent=1 // pred_fallthru
      _
    // Predicated region
    $region6: #{de_forward.1} parent=1 // pred_check
      _
    $region7: #{de_forward.1} parent=1 // pred_check_branch
      %13 = sbr.rel (0) target = $region9
    $region8: #{de_forward.1} parent=1 // pred_region
      %s15 = ssub.s32 4096, 4096
      %16 = vsyncadd [#allocation3], %s15
      %s17 = sshll.u32 [#allocation2], 4
      %s18 = int_to_ptr.vmem [resolvable:$true] %s17
      %23 = dma.hbm_to_vmem [thread:$0]  %s1, 4096, %s18, [#allocation3], 512, 512, 32
    $region9: #{de_forward.1} parent=1 // pred_fallthru
      _
    // Predicated region
    $region10: #{de_forward.1} parent=1 // pred_check
      _
    $region11: #{de_forward.1} parent=1 // pred_check_branch
      %25 = sbr.rel (0) target = $region13
    $region12: #{de_forward.1} parent=1 // pred_region
      _
    $region13: #{de_forward.1} parent=1 // pred_fallthru
      _
    // Predicated region
    $region14: #{de_forward.1} parent=1 // pred_check
      _
    $region15: #{de_forward.1} parent=1 // pred_check_branch
      %27 = sbr.rel (0) target = $region17
    $region16: #{de_forward.1} parent=1 // pred_region
      %28 = dma.done [#allocation3], 4096
    $region17: #{de_forward.1} parent=1 // pred_fallthru
      _
    %v30 = vld [vmem:[%s0] sm:$0xff]
    %v31 = vld [vmem:[%s0 + $0x8] sm:$0xff]
    %v32 = vld [vmem:[%s0 + $0x10] sm:$0xff]
    %v33 = vld [vmem:[%s0 + $0x18] sm:$0xff]
    %v34 = vld [vmem:[%s0 + $0x20] sm:$0xff]
    %v35 = vld [vmem:[%s0 + $0x28] sm:$0xff]
    %v36 = vld [vmem:[%s0 + $0x30] sm:$0xff]
    %v37 = vld [vmem:[%s0 + $0x38] sm:$0xff]
    %v38 = vld [vmem:[%s0 + $0x40] sm:$0xff]
    %v39 = vld [vmem:[%s0 + $0x48] sm:$0xff]
    %v40 = vld [vmem:[%s0 + $0x50] sm:$0xff]
    %v41 = vld [vmem:[%s0 + $0x58] sm:$0xff]
    %v42 = vld [vmem:[%s0 + $0x60] sm:$0xff]
    %v43 = vld [vmem:[%s0 + $0x68] sm:$0xff]
    %v44 = vld [vmem:[%s0 + $0x70] sm:$0xff]
    %v45 = vld [vmem:[%s0 + $0x78] sm:$0xff]
    %v46 = vpack.c.bf16 %v31, %v30
    %v47 = vpack.c.bf16 %v33, %v32
    %v48 = vpack.c.bf16 %v35, %v34
    %v49 = vpack.c.bf16 %v37, %v36
    %v50 = vpack.c.bf16 %v39, %v38
    %v51 = vpack.c.bf16 %v41, %v40
    %v52 = vpack.c.bf16 %v43, %v42
    %v53 = vpack.c.bf16 %v45, %v44
    %v54 = vld [vmem:[#allocation2] sm:$0xff]
    %v55 = vld [vmem:[#allocation2 + $0x8] sm:$0xff]
    %v56 = vld [vmem:[#allocation2 + $0x10] sm:$0xff]
    %v57 = vld [vmem:[#allocation2 + $0x18] sm:$0xff]
    %v58 = vld [vmem:[#allocation2 + $0x20] sm:$0xff]
    %v59 = vld [vmem:[#allocation2 + $0x28] sm:$0xff]
    %v60 = vld [vmem:[#allocation2 + $0x30] sm:$0xff]
    %v61 = vld [vmem:[#allocation2 + $0x38] sm:$0xff]
    %v62 = vld [vmem:[#allocation2 + $0x40] sm:$0xff]
    %v63 = vld [vmem:[#allocation2 + $0x48] sm:$0xff]
    %v64 = vld [vmem:[#allocation2 + $0x50] sm:$0xff]
    %v65 = vld [vmem:[#allocation2 + $0x58] sm:$0xff]
    %v66 = vld [vmem:[#allocation2 + $0x60] sm:$0xff]
    %v67 = vld [vmem:[#allocation2 + $0x68] sm:$0xff]
    %v68 = vld [vmem:[#allocation2 + $0x70] sm:$0xff]
    %v69 = vld [vmem:[#allocation2 + $0x78] sm:$0xff]
    %v70 = vld [vmem:[#allocation2 + $0x80] sm:$0xff]
    %v71 = vld [vmem:[#allocation2 + $0x88] sm:$0xff]
    %v72 = vld [vmem:[#allocation2 + $0x90] sm:$0xff]
    %v73 = vld [vmem:[#allocation2 + $0x98] sm:$0xff]
    %v74 = vld [vmem:[#allocation2 + $0xa0] sm:$0xff]
    %v75 = vld [vmem:[#allocation2 + $0xa8] sm:$0xff]
    %v76 = vld [vmem:[#allocation2 + $0xb0] sm:$0xff]
    %v77 = vld [vmem:[#allocation2 + $0xb8] sm:$0xff]
    %v78 = vld [vmem:[#allocation2 + $0xc0] sm:$0xff]
    %v79 = vld [vmem:[#allocation2 + $0xc8] sm:$0xff]
    %v80 = vld [vmem:[#allocation2 + $0xd0] sm:$0xff]
    %v81 = vld [vmem:[#allocation2 + $0xd8] sm:$0xff]
    %v82 = vld [vmem:[#allocation2 + $0xe0] sm:$0xff]
    %v83 = vld [vmem:[#allocation2 + $0xe8] sm:$0xff]
    %v84 = vld [vmem:[#allocation2 + $0xf0] sm:$0xff]
    %v85 = vld [vmem:[#allocation2 + $0xf8] sm:$0xff]
    %v86 = vld [vmem:[%s2] sm:$0xff]
    %v88 = vlaneseq
    %v89 = vshrl.u32 %v88, 7
    %v90 = vsub.s32 0, %v89
    %v91 = vrot.slane %v86, %v90
    %v92 = vlaneseq
    %v93 = vshrl.u32 %v92, 7
    %v94 = vsub.s32 1, %v93
    %v95 = vrot.slane %v86, %v94
    %v96 = vlaneseq
    %v97 = vshrl.u32 %v96, 7
    %v98 = vsub.s32 2, %v97
    %v99 = vrot.slane %v86, %v98
    %v100 = vlaneseq
    %v101 = vshrl.u32 %v100, 7
    %v102 = vsub.s32 3, %v101
    %v103 = vrot.slane %v86, %v102
    %v104 = vlaneseq
    %v105 = vshrl.u32 %v104, 7
    %v106 = vsub.s32 4, %v105
    %v107 = vrot.slane %v86, %v106
    %v108 = vlaneseq
    %v109 = vshrl.u32 %v108, 7
    %v110 = vsub.s32 5, %v109
    %v111 = vrot.slane %v86, %v110
    %v112 = vlaneseq
    %v113 = vshrl.u32 %v112, 7
    %v114 = vsub.s32 6, %v113
    %v115 = vrot.slane %v86, %v114
    %v116 = vlaneseq
    %v117 = vshrl.u32 %v116, 7
    %v118 = vsub.s32 7, %v117
    %v119 = vrot.slane %v86, %v118
    %v160 = vunpack.c.l.b16 %v54
    %v161 = vunpack.c.h.b16 %v54
    %v162 = vunpack.c.l.b16 %v55
    %v163 = vunpack.c.h.b16 %v55
    %v164 = vunpack.c.l.b16 %v56
    %v165 = vunpack.c.h.b16 %v56
    %v166 = vunpack.c.l.b16 %v57
    %v167 = vunpack.c.h.b16 %v57
    %v168 = vunpack.c.l.b16 %v58
    %v169 = vunpack.c.h.b16 %v58
    %v170 = vunpack.c.l.b16 %v59
    %v171 = vunpack.c.h.b16 %v59
    %v172 = vunpack.c.l.b16 %v60
    %v173 = vunpack.c.h.b16 %v60
    %v174 = vunpack.c.l.b16 %v61
    %v175 = vunpack.c.h.b16 %v61
    %v176 = vunpack.c.l.b16 %v62
    %v177 = vunpack.c.h.b16 %v62
    %v178 = vunpack.c.l.b16 %v63
    %v179 = vunpack.c.h.b16 %v63
    %v180 = vunpack.c.l.b16 %v64
    %v181 = vunpack.c.h.b16 %v64
    %v182 = vunpack.c.l.b16 %v65
    %v183 = vunpack.c.h.b16 %v65
    %v184 = vunpack.c.l.b16 %v66
    %v185 = vunpack.c.h.b16 %v66
    %v186 = vunpack.c.l.b16 %v67
    %v187 = vunpack.c.h.b16 %v67
    %v188 = vunpack.c.l.b16 %v68
    %v189 = vunpack.c.h.b16 %v68
    %v190 = vunpack.c.l.b16 %v69
    %v191 = vunpack.c.h.b16 %v69
    %v192 = vunpack.c.l.b16 %v70
    %v193 = vunpack.c.h.b16 %v70
    %v194 = vunpack.c.l.b16 %v71
    %v195 = vunpack.c.h.b16 %v71
    %v196 = vunpack.c.l.b16 %v72
    %v197 = vunpack.c.h.b16 %v72
    %v198 = vunpack.c.l.b16 %v73
    %v199 = vunpack.c.h.b16 %v73
    %v200 = vunpack.c.l.b16 %v74
    %v201 = vunpack.c.h.b16 %v74
    %v202 = vunpack.c.l.b16 %v75
    %v203 = vunpack.c.h.b16 %v75
    %v204 = vunpack.c.l.b16 %v76
    %v205 = vunpack.c.h.b16 %v76
    %v206 = vunpack.c.l.b16 %v77
    %v207 = vunpack.c.h.b16 %v77
    %v208 = vunpack.c.l.b16 %v78
    %v209 = vunpack.c.h.b16 %v78
    %v210 = vunpack.c.l.b16 %v79
    %v211 = vunpack.c.h.b16 %v79
    %v212 = vunpack.c.l.b16 %v80
    %v213 = vunpack.c.h.b16 %v80
    %v214 = vunpack.c.l.b16 %v81
    %v215 = vunpack.c.h.b16 %v81
    %v216 = vunpack.c.l.b16 %v82
    %v217 = vunpack.c.h.b16 %v82
    %v218 = vunpack.c.l.b16 %v83
    %v219 = vunpack.c.h.b16 %v83
    %v220 = vunpack.c.l.b16 %v84
    %v221 = vunpack.c.h.b16 %v84
    %v222 = vunpack.c.l.b16 %v85
    %v223 = vunpack.c.h.b16 %v85
    %v224 = vpack.c.b16 %v168, %v160
    %v225 = vpack.c.b16 %v169, %v161
    %v226 = vpack.c.b16 %v170, %v162
    %v227 = vpack.c.b16 %v171, %v163
    %v228 = vpack.c.b16 %v172, %v164
    %v229 = vpack.c.b16 %v173, %v165
    %v230 = vpack.c.b16 %v174, %v166
    %v231 = vpack.c.b16 %v175, %v167
    %v232 = vpack.c.b16 %v184, %v176
    %v233 = vpack.c.b16 %v185, %v177
    %v234 = vpack.c.b16 %v186, %v178
    %v235 = vpack.c.b16 %v187, %v179
    %v236 = vpack.c.b16 %v188, %v180
    %v237 = vpack.c.b16 %v189, %v181
    %v238 = vpack.c.b16 %v190, %v182
    %v239 = vpack.c.b16 %v191, %v183
    %v240 = vpack.c.b16 %v200, %v192
    %v241 = vpack.c.b16 %v201, %v193
    %v242 = vpack.c.b16 %v202, %v194
    %v243 = vpack.c.b16 %v203, %v195
    %v244 = vpack.c.b16 %v204, %v196
    %v245 = vpack.c.b16 %v205, %v197
    %v246 = vpack.c.b16 %v206, %v198
    %v247 = vpack.c.b16 %v207, %v199
    %v248 = vpack.c.b16 %v216, %v208
    %v249 = vpack.c.b16 %v217, %v209
    %v250 = vpack.c.b16 %v218, %v210
    %v251 = vpack.c.b16 %v219, %v211
    %v252 = vpack.c.b16 %v220, %v212
    %v253 = vpack.c.b16 %v221, %v213
    %v254 = vpack.c.b16 %v222, %v214
    %v255 = vpack.c.b16 %v223, %v215
    %vm288 = vcmask 523264
    %v290 = vsel %vm288, %v46, 0
    %v293 = vsel %vm288, %v47, 0
    %v296 = vsel %vm288, %v48, 0
    %v299 = vsel %vm288, %v49, 0
    %v302 = vsel %vm288, %v50, 0
    %v305 = vsel %vm288, %v51, 0
    %v308 = vsel %vm288, %v52, 0
    %v311 = vsel %vm288, %v53, 0
    %313 = vmatprep.subr.bf16.mxu0 %v225
    %314 = vmatpush1.bf16.msra.mxu0 %v224
    %315 = vmatprep.subr.bf16.mxu0 %v233
    %316 = vmatpush1.bf16.msra.mxu0 %v232
    %317 = vmatprep.subr.bf16.mxu0 %v241
    %318 = vmatpush1.bf16.msra.mxu0 %v240
    %319 = vmatprep.subr.bf16.mxu0 %v249
    %320 = vmatpush1.bf16.msra.mxu0 %v248
    %321 = vmatprep.subr.bf16.mxu0 0
    %322 = vmatpush1.bf16.msra.mxu0 0
    %323 = vmatprep.subr.bf16.mxu0 0
    %324 = vmatpush1.bf16.msra.mxu0 0
    %325 = vmatprep.subr.bf16.mxu0 0
    %326 = vmatpush1.bf16.msra.mxu0 0
    %327 = vmatprep.subr.bf16.mxu0 0
    %328 = vmatpush1.bf16.msra.mxu0 0
    %329 = vmatprep.subr.bf16.mxu0 0
    %330 = vmatpush1.bf16.msra.mxu0 0
    %331 = vmatprep.subr.bf16.mxu0 0
    %332 = vmatpush1.bf16.msra.mxu0 0
    %333 = vmatprep.subr.bf16.mxu0 0
    %334 = vmatpush1.bf16.msra.mxu0 0
    %335 = vmatprep.subr.bf16.mxu0 0
    %336 = vmatpush1.bf16.msra.mxu0 0
    %337 = vmatprep.subr.bf16.mxu0 0
    %338 = vmatpush1.bf16.msra.mxu0 0
    %339 = vmatprep.subr.bf16.mxu0 0
    %340 = vmatpush1.bf16.msra.mxu0 0
    %341 = vmatprep.subr.bf16.mxu0 0
    %342 = vmatpush1.bf16.msra.mxu0 0
    %343 = vmatprep.subr.bf16.mxu0 0
    %344 = vmatpush1.bf16.msra.mxu0 0
    %345 = vmatprep.mubr.bf16.mxu0 0
    %346 = vmatmul.mubr.bf16.gmra.mrb[0].mxu0 %v290
    %v347 = vpop.f32.mrb[0].mxu0
    %v348 = vadd.f32 %v91, %v347
    %v349 = vpop.f32.mrb[0].mxu0
    %v350 = vadd.f32 %v95, %v349
    %v351 = vpop.f32.mrb[0].mxu0
    %v352 = vadd.f32 %v91, %v351
    %v353 = vpop.f32.mrb[0].mxu0
    %v354 = vadd.f32 %v95, %v353
    %355 = vmatprep.mubr.bf16.mxu0 0
    %356 = vmatmul.mubr.bf16.gmra.mrb[0].mxu0 %v293
    %v357 = vpop.f32.mrb[0].mxu0
    %v358 = vadd.f32 %v91, %v357
    %v359 = vpop.f32.mrb[0].mxu0
    %v360 = vadd.f32 %v95, %v359
    %v361 = vpop.f32.mrb[0].mxu0
    %v362 = vadd.f32 %v91, %v361
    %v363 = vpop.f32.mrb[0].mxu0
    %v364 = vadd.f32 %v95, %v363
    %365 = vmatprep.mubr.bf16.mxu0 0
    %366 = vmatmul.mubr.bf16.gmra.mrb[0].mxu0 %v296
    %v367 = vpop.f32.mrb[0].mxu0
    %v368 = vadd.f32 %v91, %v367
    %v369 = vpop.f32.mrb[0].mxu0
    %v370 = vadd.f32 %v95, %v369
    %v371 = vpop.f32.mrb[0].mxu0
    %v372 = vadd.f32 %v91, %v371
    %v373 = vpop.f32.mrb[0].mxu0
    %v374 = vadd.f32 %v95, %v373
    %375 = vmatprep.mubr.bf16.mxu0 0
    %376 = vmatmul.mubr.bf16.gmra.mrb[0].mxu0 %v299
    %v377 = vpop.f32.mrb[0].mxu0
    %v378 = vadd.f32 %v91, %v377
    %v379 = vpop.f32.mrb[0].mxu0
    %v380 = vadd.f32 %v95, %v379
    %v381 = vpop.f32.mrb[0].mxu0
    %v382 = vadd.f32 %v91, %v381
    %v383 = vpop.f32.mrb[0].mxu0
    %v384 = vadd.f32 %v95, %v383
    %385 = vmatprep.mubr.bf16.mxu0 0
    %386 = vmatmul.mubr.bf16.gmra.mrb[0].mxu0 %v302
    %v387 = vpop.f32.mrb[0].mxu0
    %v388 = vadd.f32 %v91, %v387
    %v389 = vpop.f32.mrb[0].mxu0
    %v390 = vadd.f32 %v95, %v389
    %v391 = vpop.f32.mrb[0].mxu0
    %v392 = vadd.f32 %v91, %v391
    %v393 = vpop.f32.mrb[0].mxu0
    %v394 = vadd.f32 %v95, %v393
    %395 = vmatprep.mubr.bf16.mxu0 0
    %396 = vmatmul.mubr.bf16.gmra.mrb[0].mxu0 %v305
    %v397 = vpop.f32.mrb[0].mxu0
    %v398 = vadd.f32 %v91, %v397
    %v399 = vpop.f32.mrb[0].mxu0
    %v400 = vadd.f32 %v95, %v399
    %v401 = vpop.f32.mrb[0].mxu0
    %v402 = vadd.f32 %v91, %v401
    %v403 = vpop.f32.mrb[0].mxu0
    %v404 = vadd.f32 %v95, %v403
    %405 = vmatprep.mubr.bf16.mxu0 0
    %406 = vmatmul.mubr.bf16.gmra.mrb[0].mxu0 %v308
    %v407 = vpop.f32.mrb[0].mxu0
    %v408 = vadd.f32 %v91, %v407
    %v409 = vpop.f32.mrb[0].mxu0
    %v410 = vadd.f32 %v95, %v409
    %v411 = vpop.f32.mrb[0].mxu0
    %v412 = vadd.f32 %v91, %v411
    %v413 = vpop.f32.mrb[0].mxu0
    %v414 = vadd.f32 %v95, %v413
    %415 = vmatprep.mubr.bf16.mxu0 0
    %416 = vmatmul.mubr.bf16.gmra.mrb[0].mxu0 %v311
    %v417 = vpop.f32.mrb[0].mxu0
    %v418 = vadd.f32 %v91, %v417
    %v419 = vpop.f32.mrb[0].mxu0
    %v420 = vadd.f32 %v95, %v419
    %v421 = vpop.f32.mrb[0].mxu0
    %v422 = vadd.f32 %v91, %v421
    %v423 = vpop.f32.mrb[0].mxu0
    %v424 = vadd.f32 %v95, %v423
    %425 = vdwg.mxu0
    %426 = vmatprep.subr.bf16.mxu0 %v227
    %427 = vmatpush1.bf16.msra.mxu0 %v226
    %428 = vmatprep.subr.bf16.mxu0 %v235
    %429 = vmatpush1.bf16.msra.mxu0 %v234
    %430 = vmatprep.subr.bf16.mxu0 %v243
    %431 = vmatpush1.bf16.msra.mxu0 %v242
    %432 = vmatprep.subr.bf16.mxu0 %v251
    %433 = vmatpush1.bf16.msra.mxu0 %v250
    %434 = vmatprep.subr.bf16.mxu0 0
    %435 = vmatpush1.bf16.msra.mxu0 0
    %436 = vmatprep.subr.bf16.mxu0 0
    %437 = vmatpush1.bf16.msra.mxu0 0
    %438 = vmatprep.subr.bf16.mxu0 0
    %439 = vmatpush1.bf16.msra.mxu0 0
    %440 = vmatprep.subr.bf16.mxu0 0
    %441 = vmatpush1.bf16.msra.mxu0 0
    %442 = vmatprep.subr.bf16.mxu0 0
    %443 = vmatpush1.bf16.msra.mxu0 0
    %444 = vmatprep.subr.bf16.mxu0 0
    %445 = vmatpush1.bf16.msra.mxu0 0
    %446 = vmatprep.subr.bf16.mxu0 0
    %447 = vmatpush1.bf16.msra.mxu0 0
    %448 = vmatprep.subr.bf16.mxu0 0
    %449 = vmatpush1.bf16.msra.mxu0 0
    %450 = vmatprep.subr.bf16.mxu0 0
    %451 = vmatpush1.bf16.msra.mxu0 0
    %452 = vmatprep.subr.bf16.mxu0 0
    %453 = vmatpush1.bf16.msra.mxu0 0
    %454 = vmatprep.subr.bf16.mxu0 0
    %455 = vmatpush1.bf16.msra.mxu0 0
    %456 = vmatprep.subr.bf16.mxu0 0
    %457 = vmatpush1.bf16.msra.mxu0 0
    %458 = vmatprep.mubr.bf16.mxu0 0
    %459 = vmatmul.mubr.bf16.gmra.mrb[0].mxu0 %v290
    %v460 = vpop.f32.mrb[0].mxu0
    %v461 = vadd.f32 %v99, %v460
    %v462 = vpop.f32.mrb[0].mxu0
    %v463 = vadd.f32 %v103, %v462
    %v464 = vpop.f32.mrb[0].mxu0
    %v465 = vadd.f32 %v99, %v464
    %v466 = vpop.f32.mrb[0].mxu0
    %v467 = vadd.f32 %v103, %v466
    %468 = vmatprep.mubr.bf16.mxu0 0
    %469 = vmatmul.mubr.bf16.gmra.mrb[0].mxu0 %v293
    %v470 = vpop.f32.mrb[0].mxu0
    %v471 = vadd.f32 %v99, %v470
    %v472 = vpop.f32.mrb[0].mxu0
    %v473 = vadd.f32 %v103, %v472
    %v474 = vpop.f32.mrb[0].mxu0
    %v475 = vadd.f32 %v99, %v474
    %v476 = vpop.f32.mrb[0].mxu0
    %v477 = vadd.f32 %v103, %v476
    %478 = vmatprep.mubr.bf16.mxu0 0
    %479 = vmatmul.mubr.bf16.gmra.mrb[0].mxu0 %v296
    %v480 = vpop.f32.mrb[0].mxu0
    %v481 = vadd.f32 %v99, %v480
    %v482 = vpop.f32.mrb[0].mxu0
    %v483 = vadd.f32 %v103, %v482
    %v484 = vpop.f32.mrb[0].mxu0
    %v485 = vadd.f32 %v99, %v484
    %v486 = vpop.f32.mrb[0].mxu0
    %v487 = vadd.f32 %v103, %v486
    %488 = vmatprep.mubr.bf16.mxu0 0
    %489 = vmatmul.mubr.bf16.gmra.mrb[0].mxu0 %v299
    %v490 = vpop.f32.mrb[0].mxu0
    %v491 = vadd.f32 %v99, %v490
    %v492 = vpop.f32.mrb[0].mxu0
    %v493 = vadd.f32 %v103, %v492
    %v494 = vpop.f32.mrb[0].mxu0
    %v495 = vadd.f32 %v99, %v494
    %v496 = vpop.f32.mrb[0].mxu0
    %v497 = vadd.f32 %v103, %v496
    %498 = vmatprep.mubr.bf16.mxu0 0
    %499 = vmatmul.mubr.bf16.gmra.mrb[0].mxu0 %v302
    %v500 = vpop.f32.mrb[0].mxu0
    %v501 = vadd.f32 %v99, %v500
    %v502 = vpop.f32.mrb[0].mxu0
    %v503 = vadd.f32 %v103, %v502
    %v504 = vpop.f32.mrb[0].mxu0
    %v505 = vadd.f32 %v99, %v504
    %v506 = vpop.f32.mrb[0].mxu0
    %v507 = vadd.f32 %v103, %v506
    %508 = vmatprep.mubr.bf16.mxu0 0
    %509 = vmatmul.mubr.bf16.gmra.mrb[0].mxu0 %v305
    %v510 = vpop.f32.mrb[0].mxu0
    %v511 = vadd.f32 %v99, %v510
    %v512 = vpop.f32.mrb[0].mxu0
    %v513 = vadd.f32 %v103, %v512
    %v514 = vpop.f32.mrb[0].mxu0
    %v515 = vadd.f32 %v99, %v514
    %v516 = vpop.f32.mrb[0].mxu0
    %v517 = vadd.f32 %v103, %v516
    %518 = vmatprep.mubr.bf16.mxu0 0
    %519 = vmatmul.mubr.bf16.gmra.mrb[0].mxu0 %v308
    %v520 = vpop.f32.mrb[0].mxu0
    %v521 = vadd.f32 %v99, %v520
    %v522 = vpop.f32.mrb[0].mxu0
    %v523 = vadd.f32 %v103, %v522
    %v524 = vpop.f32.mrb[0].mxu0
    %v525 = vadd.f32 %v99, %v524
    %v526 = vpop.f32.mrb[0].mxu0
    %v527 = vadd.f32 %v103, %v526
    %528 = vmatprep.mubr.bf16.mxu0 0
    %529 = vmatmul.mubr.bf16.gmra.mrb[0].mxu0 %v311
    %v530 = vpop.f32.mrb[0].mxu0
    %v531 = vadd.f32 %v99, %v530
    %v532 = vpop.f32.mrb[0].mxu0
    %v533 = vadd.f32 %v103, %v532
    %v534 = vpop.f32.mrb[0].mxu0
    %v535 = vadd.f32 %v99, %v534
    %v536 = vpop.f32.mrb[0].mxu0
    %v537 = vadd.f32 %v103, %v536
    %538 = vdwg.mxu0
    %539 = vmatprep.subr.bf16.mxu0 %v229
    %540 = vmatpush1.bf16.msra.mxu0 %v228
    %541 = vmatprep.subr.bf16.mxu0 %v237
    %542 = vmatpush1.bf16.msra.mxu0 %v236
    %543 = vmatprep.subr.bf16.mxu0 %v245
    %544 = vmatpush1.bf16.msra.mxu0 %v244
    %545 = vmatprep.subr.bf16.mxu0 %v253
    %546 = vmatpush1.bf16.msra.mxu0 %v252
    %547 = vmatprep.subr.bf16.mxu0 0
    %548 = vmatpush1.bf16.msra.mxu0 0
    %549 = vmatprep.subr.bf16.mxu0 0
    %550 = vmatpush1.bf16.msra.mxu0 0
    %551 = vmatprep.subr.bf16.mxu0 0
    %552 = vmatpush1.bf16.msra.mxu0 0
    %553 = vmatprep.subr.bf16.mxu0 0
    %554 = vmatpush1.bf16.msra.mxu0 0
    %555 = vmatprep.subr.bf16.mxu0 0
    %556 = vmatpush1.bf16.msra.mxu0 0
    %557 = vmatprep.subr.bf16.mxu0 0
    %558 = vmatpush1.bf16.msra.mxu0 0
    %559 = vmatprep.subr.bf16.mxu0 0
    %560 = vmatpush1.bf16.msra.mxu0 0
    %561 = vmatprep.subr.bf16.mxu0 0
    %562 = vmatpush1.bf16.msra.mxu0 0
    %563 = vmatprep.subr.bf16.mxu0 0
    %564 = vmatpush1.bf16.msra.mxu0 0
    %565 = vmatprep.subr.bf16.mxu0 0
    %566 = vmatpush1.bf16.msra.mxu0 0
    %567 = vmatprep.subr.bf16.mxu0 0
    %568 = vmatpush1.bf16.msra.mxu0 0
    %569 = vmatprep.subr.bf16.mxu0 0
    %570 = vmatpush1.bf16.msra.mxu0 0
    %571 = vmatprep.mubr.bf16.mxu0 0
    %572 = vmatmul.mubr.bf16.gmra.mrb[0].mxu0 %v290
    %v573 = vpop.f32.mrb[0].mxu0
    %v574 = vadd.f32 %v107, %v573
    %v575 = vpop.f32.mrb[0].mxu0
    %v576 = vadd.f32 %v111, %v575
    %v577 = vpop.f32.mrb[0].mxu0
    %v578 = vadd.f32 %v107, %v577
    %v579 = vpop.f32.mrb[0].mxu0
    %v580 = vadd.f32 %v111, %v579
    %581 = vmatprep.mubr.bf16.mxu0 0
    %582 = vmatmul.mubr.bf16.gmra.mrb[0].mxu0 %v293
    %v583 = vpop.f32.mrb[0].mxu0
    %v584 = vadd.f32 %v107, %v583
    %v585 = vpop.f32.mrb[0].mxu0
    %v586 = vadd.f32 %v111, %v585
    %v587 = vpop.f32.mrb[0].mxu0
    %v588 = vadd.f32 %v107, %v587
    %v589 = vpop.f32.mrb[0].mxu0
    %v590 = vadd.f32 %v111, %v589
    %591 = vmatprep.mubr.bf16.mxu0 0
    %592 = vmatmul.mubr.bf16.gmra.mrb[0].mxu0 %v296
    %v593 = vpop.f32.mrb[0].mxu0
    %v594 = vadd.f32 %v107, %v593
    %v595 = vpop.f32.mrb[0].mxu0
    %v596 = vadd.f32 %v111, %v595
    %v597 = vpop.f32.mrb[0].mxu0
    %v598 = vadd.f32 %v107, %v597
    %v599 = vpop.f32.mrb[0].mxu0
    %v600 = vadd.f32 %v111, %v599
    %601 = vmatprep.mubr.bf16.mxu0 0
    %602 = vmatmul.mubr.bf16.gmra.mrb[0].mxu0 %v299
    %v603 = vpop.f32.mrb[0].mxu0
    %v604 = vadd.f32 %v107, %v603
    %v605 = vpop.f32.mrb[0].mxu0
    %v606 = vadd.f32 %v111, %v605
    %v607 = vpop.f32.mrb[0].mxu0
    %v608 = vadd.f32 %v107, %v607
    %v609 = vpop.f32.mrb[0].mxu0
    %v610 = vadd.f32 %v111, %v609
    %611 = vmatprep.mubr.bf16.mxu0 0
    %612 = vmatmul.mubr.bf16.gmra.mrb[0].mxu0 %v302
    %v613 = vpop.f32.mrb[0].mxu0
    %v614 = vadd.f32 %v107, %v613
    %v615 = vpop.f32.mrb[0].mxu0
    %v616 = vadd.f32 %v111, %v615
    %v617 = vpop.f32.mrb[0].mxu0
    %v618 = vadd.f32 %v107, %v617
    %v619 = vpop.f32.mrb[0].mxu0
    %v620 = vadd.f32 %v111, %v619
    %621 = vmatprep.mubr.bf16.mxu0 0
    %622 = vmatmul.mubr.bf16.gmra.mrb[0].mxu0 %v305
    %v623 = vpop.f32.mrb[0].mxu0
    %v624 = vadd.f32 %v107, %v623
    %v625 = vpop.f32.mrb[0].mxu0
    %v626 = vadd.f32 %v111, %v625
    %v627 = vpop.f32.mrb[0].mxu0
    %v628 = vadd.f32 %v107, %v627
    %v629 = vpop.f32.mrb[0].mxu0
    %v630 = vadd.f32 %v111, %v629
    %631 = vmatprep.mubr.bf16.mxu0 0
    %632 = vmatmul.mubr.bf16.gmra.mrb[0].mxu0 %v308
    %v633 = vpop.f32.mrb[0].mxu0
    %v634 = vadd.f32 %v107, %v633
    %v635 = vpop.f32.mrb[0].mxu0
    %v636 = vadd.f32 %v111, %v635
    %v637 = vpop.f32.mrb[0].mxu0
    %v638 = vadd.f32 %v107, %v637
    %v639 = vpop.f32.mrb[0].mxu0
    %v640 = vadd.f32 %v111, %v639
    %641 = vmatprep.mubr.bf16.mxu0 0
    %642 = vmatmul.mubr.bf16.gmra.mrb[0].mxu0 %v311
    %v643 = vpop.f32.mrb[0].mxu0
    %v644 = vadd.f32 %v107, %v643
    %v645 = vpop.f32.mrb[0].mxu0
    %v646 = vadd.f32 %v111, %v645
    %v647 = vpop.f32.mrb[0].mxu0
    %v648 = vadd.f32 %v107, %v647
    %v649 = vpop.f32.mrb[0].mxu0
    %v650 = vadd.f32 %v111, %v649
    %651 = vdwg.mxu0
    %652 = vmatprep.subr.bf16.mxu0 %v231
    %653 = vmatpush1.bf16.msra.mxu0 %v230
    %654 = vmatprep.subr.bf16.mxu0 %v239
    %655 = vmatpush1.bf16.msra.mxu0 %v238
    %656 = vmatprep.subr.bf16.mxu0 %v247
    %657 = vmatpush1.bf16.msra.mxu0 %v246
    %658 = vmatprep.subr.bf16.mxu0 %v255
    %659 = vmatpush1.bf16.msra.mxu0 %v254
    %660 = vmatprep.subr.bf16.mxu0 0
    %661 = vmatpush1.bf16.msra.mxu0 0
    %662 = vmatprep.subr.bf16.mxu0 0
    %663 = vmatpush1.bf16.msra.mxu0 0
    %664 = vmatprep.subr.bf16.mxu0 0
    %665 = vmatpush1.bf16.msra.mxu0 0
    %666 = vmatprep.subr.bf16.mxu0 0
    %667 = vmatpush1.bf16.msra.mxu0 0
    %668 = vmatprep.subr.bf16.mxu0 0
    %669 = vmatpush1.bf16.msra.mxu0 0
    %670 = vmatprep.subr.bf16.mxu0 0
    %671 = vmatpush1.bf16.msra.mxu0 0
    %672 = vmatprep.subr.bf16.mxu0 0
    %673 = vmatpush1.bf16.msra.mxu0 0
    %674 = vmatprep.subr.bf16.mxu0 0
    %675 = vmatpush1.bf16.msra.mxu0 0
    %676 = vmatprep.subr.bf16.mxu0 0
    %677 = vmatpush1.bf16.msra.mxu0 0
    %678 = vmatprep.subr.bf16.mxu0 0
    %679 = vmatpush1.bf16.msra.mxu0 0
    %680 = vmatprep.subr.bf16.mxu0 0
    %681 = vmatpush1.bf16.msra.mxu0 0
    %682 = vmatprep.subr.bf16.mxu0 0
    %683 = vmatpush1.bf16.msra.mxu0 0
    %684 = vmatprep.mubr.bf16.mxu0 0
    %685 = vmatmul.mubr.bf16.gmra.mrb[0].mxu0 %v290
    %v686 = vpop.f32.mrb[0].mxu0
    %v687 = vadd.f32 %v115, %v686
    %v688 = vpop.f32.mrb[0].mxu0
    %v689 = vadd.f32 %v119, %v688
    %v690 = vpop.f32.mrb[0].mxu0
    %v691 = vadd.f32 %v115, %v690
    %v692 = vpop.f32.mrb[0].mxu0
    %v693 = vadd.f32 %v119, %v692
    %694 = vmatprep.mubr.bf16.mxu0 0
    %695 = vmatmul.mubr.bf16.gmra.mrb[0].mxu0 %v293
    %v696 = vpop.f32.mrb[0].mxu0
    %v697 = vadd.f32 %v115, %v696
    %v698 = vpop.f32.mrb[0].mxu0
    %v699 = vadd.f32 %v119, %v698
    %v700 = vpop.f32.mrb[0].mxu0
    %v701 = vadd.f32 %v115, %v700
    %v702 = vpop.f32.mrb[0].mxu0
    %v703 = vadd.f32 %v119, %v702
    %704 = vmatprep.mubr.bf16.mxu0 0
    %705 = vmatmul.mubr.bf16.gmra.mrb[0].mxu0 %v296
    %v706 = vpop.f32.mrb[0].mxu0
    %v707 = vadd.f32 %v115, %v706
    %v708 = vpop.f32.mrb[0].mxu0
    %v709 = vadd.f32 %v119, %v708
    %v710 = vpop.f32.mrb[0].mxu0
    %v711 = vadd.f32 %v115, %v710
    %v712 = vpop.f32.mrb[0].mxu0
    %v713 = vadd.f32 %v119, %v712
    %714 = vmatprep.mubr.bf16.mxu0 0
    %715 = vmatmul.mubr.bf16.gmra.mrb[0].mxu0 %v299
    %v716 = vpop.f32.mrb[0].mxu0
    %v717 = vadd.f32 %v115, %v716
    %v718 = vpop.f32.mrb[0].mxu0
    %v719 = vadd.f32 %v119, %v718
    %v720 = vpop.f32.mrb[0].mxu0
    %v721 = vadd.f32 %v115, %v720
    %v722 = vpop.f32.mrb[0].mxu0
    %v723 = vadd.f32 %v119, %v722
    %724 = vmatprep.mubr.bf16.mxu0 0
    %725 = vmatmul.mubr.bf16.gmra.mrb[0].mxu0 %v302
    %v726 = vpop.f32.mrb[0].mxu0
    %v727 = vadd.f32 %v115, %v726
    %v728 = vpop.f32.mrb[0].mxu0
    %v729 = vadd.f32 %v119, %v728
    %v730 = vpop.f32.mrb[0].mxu0
    %v731 = vadd.f32 %v115, %v730
    %v732 = vpop.f32.mrb[0].mxu0
    %v733 = vadd.f32 %v119, %v732
    %734 = vmatprep.mubr.bf16.mxu0 0
    %735 = vmatmul.mubr.bf16.gmra.mrb[0].mxu0 %v305
    %v736 = vpop.f32.mrb[0].mxu0
    %v737 = vadd.f32 %v115, %v736
    %v738 = vpop.f32.mrb[0].mxu0
    %v739 = vadd.f32 %v119, %v738
    %v740 = vpop.f32.mrb[0].mxu0
    %v741 = vadd.f32 %v115, %v740
    %v742 = vpop.f32.mrb[0].mxu0
    %v743 = vadd.f32 %v119, %v742
    %744 = vmatprep.mubr.bf16.mxu0 0
    %745 = vmatmul.mubr.bf16.gmra.mrb[0].mxu0 %v308
    %v746 = vpop.f32.mrb[0].mxu0
    %v747 = vadd.f32 %v115, %v746
    %v748 = vpop.f32.mrb[0].mxu0
    %v749 = vadd.f32 %v119, %v748
    %v750 = vpop.f32.mrb[0].mxu0
    %v751 = vadd.f32 %v115, %v750
    %v752 = vpop.f32.mrb[0].mxu0
    %v753 = vadd.f32 %v119, %v752
    %754 = vmatprep.mubr.bf16.mxu0 0
    %755 = vmatmul.mubr.bf16.gmra.mrb[0].mxu0 %v311
    %v756 = vpop.f32.mrb[0].mxu0
    %v757 = vadd.f32 %v115, %v756
    %v758 = vpop.f32.mrb[0].mxu0
    %v759 = vadd.f32 %v119, %v758
    %v760 = vpop.f32.mrb[0].mxu0
    %v761 = vadd.f32 %v115, %v760
    %v762 = vpop.f32.mrb[0].mxu0
    %v763 = vadd.f32 %v119, %v762
    %764 = vdwg.mxu0
    %765 = vst [vmem:[#allocation5] sm:$0xff] %v348
    %766 = vst [vmem:[#allocation5 + $0x8] sm:$0xff] %v350
    %767 = vst [vmem:[#allocation5 + $0x10] sm:$0xff] %v461
    %768 = vst [vmem:[#allocation5 + $0x18] sm:$0xff] %v463
    %769 = vst [vmem:[#allocation5 + $0x20] sm:$0xff] %v574
    %770 = vst [vmem:[#allocation5 + $0x28] sm:$0xff] %v576
    %771 = vst [vmem:[#allocation5 + $0x30] sm:$0xff] %v687
    %772 = vst [vmem:[#allocation5 + $0x38] sm:$0xff] %v689
    %773 = vst [vmem:[#allocation5 + $0x40] sm:$0xff] %v352
    %774 = vst [vmem:[#allocation5 + $0x48] sm:$0xff] %v354
    %775 = vst [vmem:[#allocation5 + $0x50] sm:$0xff] %v465
    %776 = vst [vmem:[#allocation5 + $0x58] sm:$0xff] %v467
    %777 = vst [vmem:[#allocation5 + $0x60] sm:$0xff] %v578
    %778 = vst [vmem:[#allocation5 + $0x68] sm:$0xff] %v580
    %779 = vst [vmem:[#allocation5 + $0x70] sm:$0xff] %v691
    %780 = vst [vmem:[#allocation5 + $0x78] sm:$0xff] %v693
    %781 = vst [vmem:[#allocation5 + $0x80] sm:$0xff] %v358
    %782 = vst [vmem:[#allocation5 + $0x88] sm:$0xff] %v360
    %783 = vst [vmem:[#allocation5 + $0x90] sm:$0xff] %v471
    %784 = vst [vmem:[#allocation5 + $0x98] sm:$0xff] %v473
    %785 = vst [vmem:[#allocation5 + $0xa0] sm:$0xff] %v584
    %786 = vst [vmem:[#allocation5 + $0xa8] sm:$0xff] %v586
    %787 = vst [vmem:[#allocation5 + $0xb0] sm:$0xff] %v697
    %788 = vst [vmem:[#allocation5 + $0xb8] sm:$0xff] %v699
    %789 = vst [vmem:[#allocation5 + $0xc0] sm:$0xff] %v362
    %790 = vst [vmem:[#allocation5 + $0xc8] sm:$0xff] %v364
    %791 = vst [vmem:[#allocation5 + $0xd0] sm:$0xff] %v475
    %792 = vst [vmem:[#allocation5 + $0xd8] sm:$0xff] %v477
    %793 = vst [vmem:[#allocation5 + $0xe0] sm:$0xff] %v588
    %794 = vst [vmem:[#allocation5 + $0xe8] sm:$0xff] %v590
    %795 = vst [vmem:[#allocation5 + $0xf0] sm:$0xff] %v701
    %796 = vst [vmem:[#allocation5 + $0xf8] sm:$0xff] %v703
    %797 = vst [vmem:[#allocation5 + $0x100] sm:$0xff] %v368
    %798 = vst [vmem:[#allocation5 + $0x108] sm:$0xff] %v370
    %799 = vst [vmem:[#allocation5 + $0x110] sm:$0xff] %v481
    %800 = vst [vmem:[#allocation5 + $0x118] sm:$0xff] %v483
    %801 = vst [vmem:[#allocation5 + $0x120] sm:$0xff] %v594
    %802 = vst [vmem:[#allocation5 + $0x128] sm:$0xff] %v596
    %803 = vst [vmem:[#allocation5 + $0x130] sm:$0xff] %v707
    %804 = vst [vmem:[#allocation5 + $0x138] sm:$0xff] %v709
    %805 = vst [vmem:[#allocation5 + $0x140] sm:$0xff] %v372
    %806 = vst [vmem:[#allocation5 + $0x148] sm:$0xff] %v374
    %807 = vst [vmem:[#allocation5 + $0x150] sm:$0xff] %v485
    %808 = vst [vmem:[#allocation5 + $0x158] sm:$0xff] %v487
    %809 = vst [vmem:[#allocation5 + $0x160] sm:$0xff] %v598
    %810 = vst [vmem:[#allocation5 + $0x168] sm:$0xff] %v600
    %811 = vst [vmem:[#allocation5 + $0x170] sm:$0xff] %v711
    %812 = vst [vmem:[#allocation5 + $0x178] sm:$0xff] %v713
    %813 = vst [vmem:[#allocation5 + $0x180] sm:$0xff] %v378
    %814 = vst [vmem:[#allocation5 + $0x188] sm:$0xff] %v380
    %815 = vst [vmem:[#allocation5 + $0x190] sm:$0xff] %v491
    %816 = vst [vmem:[#allocation5 + $0x198] sm:$0xff] %v493
    %817 = vst [vmem:[#allocation5 + $0x1a0] sm:$0xff] %v604
    %818 = vst [vmem:[#allocation5 + $0x1a8] sm:$0xff] %v606
    %819 = vst [vmem:[#allocation5 + $0x1b0] sm:$0xff] %v717
    %820 = vst [vmem:[#allocation5 + $0x1b8] sm:$0xff] %v719
    %821 = vst [vmem:[#allocation5 + $0x1c0] sm:$0xff] %v382
    %822 = vst [vmem:[#allocation5 + $0x1c8] sm:$0xff] %v384
    %823 = vst [vmem:[#allocation5 + $0x1d0] sm:$0xff] %v495
    %824 = vst [vmem:[#allocation5 + $0x1d8] sm:$0xff] %v497
    %825 = vst [vmem:[#allocation5 + $0x1e0] sm:$0xff] %v608
    %826 = vst [vmem:[#allocation5 + $0x1e8] sm:$0xff] %v610
    %827 = vst [vmem:[#allocation5 + $0x1f0] sm:$0xff] %v721
    %828 = vst [vmem:[#allocation5 + $0x1f8] sm:$0xff] %v723
    %829 = vst [vmem:[#allocation5 + $0x200] sm:$0xff] %v388
    %830 = vst [vmem:[#allocation5 + $0x208] sm:$0xff] %v390
    %831 = vst [vmem:[#allocation5 + $0x210] sm:$0xff] %v501
    %832 = vst [vmem:[#allocation5 + $0x218] sm:$0xff] %v503
    %833 = vst [vmem:[#allocation5 + $0x220] sm:$0xff] %v614
    %834 = vst [vmem:[#allocation5 + $0x228] sm:$0xff] %v616
    %835 = vst [vmem:[#allocation5 + $0x230] sm:$0xff] %v727
    %836 = vst [vmem:[#allocation5 + $0x238] sm:$0xff] %v729
    %837 = vst [vmem:[#allocation5 + $0x240] sm:$0xff] %v392
    %838 = vst [vmem:[#allocation5 + $0x248] sm:$0xff] %v394
    %839 = vst [vmem:[#allocation5 + $0x250] sm:$0xff] %v505
    %840 = vst [vmem:[#allocation5 + $0x258] sm:$0xff] %v507
    %841 = vst [vmem:[#allocation5 + $0x260] sm:$0xff] %v618
    %842 = vst [vmem:[#allocation5 + $0x268] sm:$0xff] %v620
    %843 = vst [vmem:[#allocation5 + $0x270] sm:$0xff] %v731
    %844 = vst [vmem:[#allocation5 + $0x278] sm:$0xff] %v733
    %845 = vst [vmem:[#allocation5 + $0x280] sm:$0xff] %v398
    %846 = vst [vmem:[#allocation5 + $0x288] sm:$0xff] %v400
    %847 = vst [vmem:[#allocation5 + $0x290] sm:$0xff] %v511
    %848 = vst [vmem:[#allocation5 + $0x298] sm:$0xff] %v513
    %849 = vst [vmem:[#allocation5 + $0x2a0] sm:$0xff] %v624
    %850 = vst [vmem:[#allocation5 + $0x2a8] sm:$0xff] %v626
    %851 = vst [vmem:[#allocation5 + $0x2b0] sm:$0xff] %v737
    %852 = vst [vmem:[#allocation5 + $0x2b8] sm:$0xff] %v739
    %853 = vst [vmem:[#allocation5 + $0x2c0] sm:$0xff] %v402
    %854 = vst [vmem:[#allocation5 + $0x2c8] sm:$0xff] %v404
    %855 = vst [vmem:[#allocation5 + $0x2d0] sm:$0xff] %v515
    %856 = vst [vmem:[#allocation5 + $0x2d8] sm:$0xff] %v517
    %857 = vst [vmem:[#allocation5 + $0x2e0] sm:$0xff] %v628
    %858 = vst [vmem:[#allocation5 + $0x2e8] sm:$0xff] %v630
    %859 = vst [vmem:[#allocation5 + $0x2f0] sm:$0xff] %v741
    %860 = vst [vmem:[#allocation5 + $0x2f8] sm:$0xff] %v743
    %861 = vst [vmem:[#allocation5 + $0x300] sm:$0xff] %v408
    %862 = vst [vmem:[#allocation5 + $0x308] sm:$0xff] %v410
    %863 = vst [vmem:[#allocation5 + $0x310] sm:$0xff] %v521
    %864 = vst [vmem:[#allocation5 + $0x318] sm:$0xff] %v523
    %865 = vst [vmem:[#allocation5 + $0x320] sm:$0xff] %v634
    %866 = vst [vmem:[#allocation5 + $0x328] sm:$0xff] %v636
    %867 = vst [vmem:[#allocation5 + $0x330] sm:$0xff] %v747
    %868 = vst [vmem:[#allocation5 + $0x338] sm:$0xff] %v749
    %869 = vst [vmem:[#allocation5 + $0x340] sm:$0xff] %v412
    %870 = vst [vmem:[#allocation5 + $0x348] sm:$0xff] %v414
    %871 = vst [vmem:[#allocation5 + $0x350] sm:$0xff] %v525
    %872 = vst [vmem:[#allocation5 + $0x358] sm:$0xff] %v527
    %873 = vst [vmem:[#allocation5 + $0x360] sm:$0xff] %v638
    %874 = vst [vmem:[#allocation5 + $0x368] sm:$0xff] %v640
    %875 = vst [vmem:[#allocation5 + $0x370] sm:$0xff] %v751
    %876 = vst [vmem:[#allocation5 + $0x378] sm:$0xff] %v753
    %877 = vst [vmem:[#allocation5 + $0x380] sm:$0xff] %v418
    %878 = vst [vmem:[#allocation5 + $0x388] sm:$0xff] %v420
    %879 = vst [vmem:[#allocation5 + $0x390] sm:$0xff] %v531
    %880 = vst [vmem:[#allocation5 + $0x398] sm:$0xff] %v533
    %881 = vst [vmem:[#allocation5 + $0x3a0] sm:$0xff] %v644
    %882 = vst [vmem:[#allocation5 + $0x3a8] sm:$0xff] %v646
    %883 = vst [vmem:[#allocation5 + $0x3b0] sm:$0xff] %v757
    %884 = vst [vmem:[#allocation5 + $0x3b8] sm:$0xff] %v759
    %885 = vst [vmem:[#allocation5 + $0x3c0] sm:$0xff] %v422
    %886 = vst [vmem:[#allocation5 + $0x3c8] sm:$0xff] %v424
    %887 = vst [vmem:[#allocation5 + $0x3d0] sm:$0xff] %v535
    %888 = vst [vmem:[#allocation5 + $0x3d8] sm:$0xff] %v537
    %889 = vst [vmem:[#allocation5 + $0x3e0] sm:$0xff] %v648
    %890 = vst [vmem:[#allocation5 + $0x3e8] sm:$0xff] %v650
    %891 = vst [vmem:[#allocation5 + $0x3f0] sm:$0xff] %v761
    %892 = vst [vmem:[#allocation5 + $0x3f8] sm:$0xff] %v763
    // Predicated region
    $region18: #{de_forward.1} parent=1 // pred_check
      _
    $region19: #{de_forward.1} parent=1 // pred_check_branch
      %894 = sbr.rel (0) target = $region21
    $region20: #{de_forward.1} parent=1 // pred_region
      %s896 = ssub.s32 16384, 16384
      %897 = vsyncadd [#allocation4], %s896
      %s898 = sshll.u32 [#allocation5], 4
      %s899 = int_to_ptr.vmem [resolvable:$true] %s898
      %904 = dma.vmem_to_hbm [thread:$0]  %s899, 16384, %s3, [#allocation4], 1024, 1024, 64
    $region21: #{de_forward.1} parent=1 // pred_fallthru
      _
    // Predicated region
    $region22: #{de_forward.1} parent=1 // pred_check
      _
    $region23: #{de_forward.1} parent=1 // pred_check_branch
      %906 = sbr.rel (0) target = $region25
    $region24: #{de_forward.1} parent=1 // pred_region
      %907 = dma.done [#allocation4], 16384
    $region25: #{de_forward.1} parent=1 // pred_fallthru
      _
    %908 = vsyncpa [#allocation3], 1
    %909 = vsyncpa [#allocation4], 1

</llo_original>
